<compile_context>
chip_gen: v5e
topology: v5e:2x2
jax: 0.10.0
libtpu: 0.0.40
codegen_flags: <defaults>
</compile_context>

<pallas_src>
import math

import jax
import jax.numpy as jnp
from jax.experimental import pallas as pl
from jax.experimental.pallas import tpu as pltpu


def _gelu(x):
    # matches the torch tanh-approx gelu used by the reference MLP
    return 0.5 * x * (1.0 + jnp.tanh(math.sqrt(2.0 / math.pi) * (x + 0.044715 * x * x * x)))


def _cdiv(a, b):
    return -(-a // b)


def _round_up(a, b):
    return _cdiv(a, b) * b


def _pad_to(arr, shape):
    pads = [(0, s - d) for d, s in zip(arr.shape, shape)]
    if any(p[1] for p in pads):
        arr = jnp.pad(arr, pads)
    return arr


def _vmem_capacity_bytes():
    try:
        return int(pltpu.get_tpu_info().vmem_capacity_bytes)
    except Exception:
        return 64 * 1024 * 1024   # conservative fallback: v7x per-TC VMEM


# --------------------------------------------------------------------------------------
# Kernels
# --------------------------------------------------------------------------------------
def mlp_kernel_resident(x_ref, wfc_ref, bfc_ref, wproj_ref, bproj_ref, o_ref):
    """One row tile per grid step; weights fully VMEM-resident (no reduction grid axis)."""
    h = jnp.dot(x_ref[...].astype(wfc_ref.dtype), wfc_ref[...],
                preferred_element_type=jnp.float32)
    h = _gelu(h + bfc_ref[...])                       # bias + gelu in f32
    y = jnp.dot(h.astype(wproj_ref.dtype), wproj_ref[...],
                preferred_element_type=jnp.float32)
    # dropout: identity in eval mode
    o_ref[...] = (y + bproj_ref[...]).astype(o_ref.dtype)


def mlp_kernel_tiled_f32out(x_ref, wfc_ref, bfc_ref, wproj_ref, bproj_ref, o_ref):
    """n_state streamed in chunks on the inner ("arbitrary") axis; the f32 output block
    (constant block index over j -> VMEM resident) is used directly as the accumulator."""
    j = pl.program_id(1)
    h = jnp.dot(x_ref[...].astype(wfc_ref.dtype), wfc_ref[...],
                preferred_element_type=jnp.float32)
    h = _gelu(h + bfc_ref[...])
    part = jnp.dot(h.astype(wproj_ref.dtype), wproj_ref[...],
                   preferred_element_type=jnp.float32)

    @pl.when(j == 0)
    def _():
        o_ref[...] = part + bproj_ref[...]            # no separate zero-init pass

    @pl.when(j != 0)
    def _():
        o_ref[...] += part


def mlp_kernel_tiled(x_ref, wfc_ref, bfc_ref, wproj_ref, bproj_ref, o_ref, acc_ref):
    """As above, but with an f32 scratch accumulator for non-f32 output dtypes."""
    j = pl.program_id(1)
    h = jnp.dot(x_ref[...].astype(wfc_ref.dtype), wfc_ref[...],
                preferred_element_type=jnp.float32)
    h = _gelu(h + bfc_ref[...])
    part = jnp.dot(h.astype(wproj_ref.dtype), wproj_ref[...],
                   preferred_element_type=jnp.float32)

    @pl.when(j == 0)
    def _():
        acc_ref[...] = part + bproj_ref[...]

    @pl.when(j != 0)
    def _():
        acc_ref[...] += part

    @pl.when(j == pl.num_programs(1) - 1)
    def _():
        o_ref[...] = acc_ref[...].astype(o_ref.dtype)


# --------------------------------------------------------------------------------------
# Wrappers
# --------------------------------------------------------------------------------------
def prepare_mlp_params(w_fc, b_fc, w_proj, b_proj, mxu_dtype=jnp.bfloat16):
    """One-time lane-dense pad (multiples of 128) + cast of the module parameters."""
    n_in, n_state = w_fc.shape
    n_state2, n_out = w_proj.shape
    assert n_state2 == n_state
    n_in_p = _round_up(n_in, 128)
    n_state_p = _round_up(n_state, 128)
    n_out_p = _round_up(n_out, 128)
    return dict(
        n_in=n_in, n_state=n_state, n_out=n_out,
        w_fc=_pad_to(w_fc, (n_in_p, n_state_p)).astype(mxu_dtype),
        b_fc=_pad_to(b_fc.reshape(1, n_state), (1, n_state_p)).astype(jnp.float32),
        w_proj=_pad_to(w_proj, (n_state_p, n_out_p)).astype(mxu_dtype),
        b_proj=_pad_to(b_proj.reshape(1, n_out), (1, n_out_p)).astype(jnp.float32),
    )


def mlp_forward_prepared(x, params, *, target_tm=None):
    """x: (..., n_in). Returns (..., n_out). Zero padding is exact for this math."""
    orig_shape = x.shape
    out_dtype = x.dtype
    n_in, n_state, n_out = params["n_in"], params["n_state"], params["n_out"]
    assert orig_shape[-1] == n_in
    w_fc, b_fc = params["w_fc"], params["b_fc"]
    w_proj, b_proj = params["w_proj"], params["b_proj"]
    n_in_p, n_state_p = w_fc.shape
    n_out_p = w_proj.shape[1]
    mxu_dtype = w_fc.dtype

    x2 = x.reshape(-1, n_in)
    M = x2.shape[0]

    x_bytes = jnp.dtype(x.dtype).itemsize
    out_bytes = jnp.dtype(out_dtype).itemsize
    mxu_bytes = jnp.dtype(mxu_dtype).itemsize

    vmem_cap = _vmem_capacity_bytes()
    budget = int(0.70 * vmem_cap)                       # headroom for compiler scratch
    big_vmem = vmem_cap >= 100 * 1024 * 1024            # v5e/v6e (128 MiB) vs v7x (64 MiB/TC)

    # ---- working-set estimators (all blocks assumed double-buffered) ----
    def ws_resident(tm):
        return (2 * tm * n_in_p * x_bytes
                + 2 * tm * n_out_p * out_bytes
                + 2 * (n_in_p * n_state_p + n_state_p * n_out_p) * mxu_bytes
                + 2 * (n_state_p + n_out_p) * 4
                + tm * n_state_p * (4 + mxu_bytes)      # h (f32) + bf16 copy for 2nd matmul
                + tm * n_out_p * 4)                     # f32 result of 2nd matmul

    def ws_tiled(tm, tn):
        acc = 0 if out_dtype == jnp.float32 else tm * n_out_p * 4
        return (2 * tm * n_in_p * x_bytes
                + 2 * tm * n_out_p * out_bytes
                + 2 * (n_in_p * tn + tn * n_out_p) * mxu_bytes
                + 2 * (tn + n_out_p) * 4
                + tm * tn * (4 + mxu_bytes)
                + tm * n_out_p * 4
                + acc)

    def pick_tm(target, fits):
        tm = max(16, (int(target) // 16) * 16)          # multiple of 16: bf16 sublane packing
        tm = min(tm, _round_up(M, 16))
        if M >= 256:
            # keep >= 2 row tiles so both v7x TensorCores get work on the "parallel" axis
            tm = min(tm, _round_up(_cdiv(M, 2), 16))
        while tm > 16 and not fits(tm):
            tm = max(16, ((tm // 2) // 16) * 16)
        # re-balance so the last tile is not mostly padding (e.g. M=300 -> 2 x 160, not 2 x 256)
        n_tiles = _cdiv(M, tm)
        tm = _round_up(_cdiv(M, n_tiles), 16)
        return tm, fits(tm)

    # =================== path 1: weights VMEM-resident (preferred) ===================
    target_res = target_tm if target_tm is not None else (512 if big_vmem else 320)
    tm_res, res_fits = pick_tm(target_res, lambda t: ws_resident(t) <= budget)

    if res_fits:
        tm_eff = tm_res
        M_p = _round_up(M, tm_eff)
        x_p = _pad_to(x2, (M_p, n_in_p))                # original dtype; cast happens in-kernel
        grid = (M_p // tm_eff,)

        cost = pl.CostEstimate(
            flops=2 * M_p * n_state_p * (n_in_p + n_out_p),
            transcendentals=M_p * n_state_p,
            bytes_accessed=int(x_p.size * x_bytes
                               + (w_fc.size + w_proj.size) * mxu_bytes
                               + (b_fc.size + b_proj.size) * 4
                               + M_p * n_out_p * out_bytes),
        )
        vmem_limit = int(min(int(0.875 * vmem_cap),
                             max(int(1.5 * ws_resident(tm_eff)), 32 * 1024 * 1024)))

        out = pl.pallas_call(
            mlp_kernel_resident,
            out_shape=jax.ShapeDtypeStruct((M_p, n_out_p), out_dtype),
            grid_spec=pltpu.PrefetchScalarGridSpec(
                num_scalar_prefetch=0,
                grid=grid,
                in_specs=[
                    pl.BlockSpec((tm_eff, n_in_p), lambda i: (i, 0)),      # x row tile
                    pl.BlockSpec((n_in_p, n_state_p), lambda i: (0, 0)),   # w_fc (resident)
                    pl.BlockSpec((1, n_state_p), lambda i: (0, 0)),        # b_fc (resident)
                    pl.BlockSpec((n_state_p, n_out_p), lambda i: (0, 0)),  # w_proj (resident)
                    pl.BlockSpec((1, n_out_p), lambda i: (0, 0)),          # b_proj (resident)
                ],
                out_specs=pl.BlockSpec((tm_eff, n_out_p), lambda i: (i, 0)),
            ),
            compiler_params=pltpu.CompilerParams(
                dimension_semantics=("parallel",),
                vmem_limit_bytes=vmem_limit),
            cost_estimate=cost,
        )(x_p, w_fc, b_fc, w_proj, b_proj)

        out = out[:M, :n_out]
        return out.reshape(orig_shape[:-1] + (n_out,))

    # ============== path 2: tiled fallback (weights too large for VMEM) ==============
    # TODO(synk): pre-block w_fc into (n_state_p//tn, n_in_p, tn) for fully contiguous
    #             chunk DMAs in this re-stream regime.
    tn_cap = 1024
    cands = [128 * m for m in range(1, n_state_p // 128 + 1)
             if n_state_p % (128 * m) == 0 and 128 * m <= tn_cap]
    pref = [c for c in cands if c % 256 == 0]           # full 256x256 MXU tiles on v6e/v7x
    tn = max(pref) if pref else max(cands)

    target_tiled = target_tm if target_tm is not None else (768 if big_vmem else 384)
    tm_eff, _ = pick_tm(target_tiled, lambda t: ws_tiled(t, tn) <= budget)
    M_p = _round_up(M, tm_eff)
    x_p = _pad_to(x2, (M_p, n_in_p))
    grid = (M_p // tm_eff, n_state_p // tn)

    cost = pl.CostEstimate(
        flops=2 * M_p * n_state_p * (n_in_p + n_out_p),
        transcendentals=M_p * n_state_p,
        # weights are re-streamed once per row tile while not VMEM-resident
        bytes_accessed=int(x_p.size * x_bytes
                           + grid[0] * (w_fc.size + w_proj.size) * mxu_bytes
                           + grid[0] * (b_fc.size + b_proj.size) * 4
                           + M_p * n_out_p * out_bytes),
    )
    vmem_limit = int(min(int(0.875 * vmem_cap),
                         max(int(1.5 * ws_tiled(tm_eff, tn)), 32 * 1024 * 1024)))

    f32_out = out_dtype == jnp.float32
    kernel = mlp_kernel_tiled_f32out if f32_out else mlp_kernel_tiled
    scratch = [] if f32_out else [pltpu.VMEM((tm_eff, n_out_p), jnp.float32)]

    out = pl.pallas_call(
        kernel,
        out_shape=jax.ShapeDtypeStruct((M_p, n_out_p), out_dtype),
        grid_spec=pltpu.PrefetchScalarGridSpec(
            num_scalar_prefetch=0,
            grid=grid,
            in_specs=[
                pl.BlockSpec((tm_eff, n_in_p), lambda i, j: (i, 0)),   # x tile (constant over j)
                pl.BlockSpec((n_in_p, tn), lambda i, j: (0, j)),       # w_fc chunk
                pl.BlockSpec((1, tn), lambda i, j: (0, j)),            # b_fc chunk
                pl.BlockSpec((tn, n_out_p), lambda i, j: (j, 0)),      # w_proj chunk
                pl.BlockSpec((1, n_out_p), lambda i, j: (0, 0)),       # b_proj (resident)
            ],
            out_specs=pl.BlockSpec((tm_eff, n_out_p), lambda i, j: (i, 0)),
            scratch_shapes=scratch,
        ),
        compiler_params=pltpu.CompilerParams(
            dimension_semantics=("parallel", "arbitrary"),
            vmem_limit_bytes=vmem_limit),
        cost_estimate=cost,
    )(x_p, w_fc, b_fc, w_proj, b_proj)

    out = out[:M, :n_out]
    return out.reshape(orig_shape[:-1] + (n_out,))


def mlp_forward(x, w_fc, b_fc, w_proj, b_proj, *, mxu_dtype=jnp.bfloat16, target_tm=None):
    params = prepare_mlp_params(w_fc, b_fc, w_proj, b_proj, mxu_dtype=mxu_dtype)
    return mlp_forward_prepared(x, params, target_tm=target_tm)


def reference_mlp(x, w_fc, b_fc, w_proj, b_proj, mxu_dtype=jnp.bfloat16):
    """Pure-JAX reference with the same mixed-precision policy (bf16 matmul in, f32 accum)."""
    x2 = x.reshape(-1, x.shape[-1])
    h = jnp.dot(x2.astype(mxu_dtype), w_fc.astype(mxu_dtype),
                preferred_element_type=jnp.float32) + b_fc.astype(jnp.float32)
    h = _gelu(h)
    y = jnp.dot(h.astype(mxu_dtype), w_proj.astype(mxu_dtype),
                preferred_element_type=jnp.float32) + b_proj.astype(jnp.float32)
    return y.reshape(x.shape[:-1] + (w_proj.shape[1],)).astype(x.dtype)


if __name__ == "__main__":
    key = jax.random.PRNGKey(0)
    kx, kfc, kproj, kx2, kfc2, kproj2 = jax.random.split(key, 6)

    # --- test 1: small shapes consistent with the module (batch, seq, n_embd), n_state = 4*n_embd ---
    batch, seq = 2, 8
    n_embd, n_state = 32, 128
    x = jax.random.normal(kx, (batch, seq, n_embd), dtype=jnp.float32)
    # Conv1D init: normal(std=0.02) weights, zero biases
    w_fc = 0.02 * jax.random.normal(kfc, (n_embd, n_state), dtype=jnp.float32)
    b_fc = jnp.zeros((n_state,), dtype=jnp.float32)
    w_proj = 0.02 * jax.random.normal(kproj, (n_state, n_embd), dtype=jnp.float32)
    b_proj = jnp.zeros((n_embd,), dtype=jnp.float32)

    params = prepare_mlp_params(w_fc, b_fc, w_proj, b_proj)   # parameters padded/cast once
    y = jax.block_until_ready(mlp_forward_prepared(x, params))
    y_ref = reference_mlp(x, w_fc, b_fc, w_proj, b_proj)
    assert y.shape == x.shape
    assert jnp.allclose(y, y_ref, atol=5e-4, rtol=2e-2), (
        "mismatch vs reference (test 1), max abs diff = %s"
        % float(jnp.max(jnp.abs(y - y_ref))))

    # --- test 2: ragged dims (row/lane padding paths) and M large enough for >= 2 row tiles ---
    batch2, seq2, n_in2, n_state2, n_out2 = 4, 96, 24, 96, 24
    x_b = jax.random.normal(kx2, (batch2, seq2, n_in2), dtype=jnp.float32)
    w_fc2 = 0.02 * jax.random.normal(kfc2, (n_in2, n_state2), dtype=jnp.float32)
    b_fc2 = 0.02 * jax.random.normal(kfc2, (n_state2,), dtype=jnp.float32)
    w_proj2 = 0.02 * jax.random.normal(kproj2, (n_state2, n_out2), dtype=jnp.float32)
    b_proj2 = 0.02 * jax.random.normal(kproj2, (n_out2,), dtype=jnp.float32)

    y2 = jax.block_until_ready(mlp_forward(x_b, w_fc2, b_fc2, w_proj2, b_proj2))
    y2_ref = reference_mlp(x_b, w_fc2, b_fc2, w_proj2, b_proj2)
    assert y2.shape == (batch2, seq2, n_out2)
    assert jnp.allclose(y2, y2_ref, atol=5e-4, rtol=2e-2), (
        "mismatch vs reference (test 2), max abs diff = %s"
        % float(jnp.max(jnp.abs(y2 - y2_ref))))

    print("KERNEL_OK")
</pallas_src>

<mosaic_0001>
module attributes {stable_mosaic.version = 11 : i64} {
  func.func @mlp_kernel_resident(%arg0: i32, %arg1: memref<16x128xf32, #tpu.memory_space<vmem>>, %arg2: memref<128x128xbf16, #tpu.memory_space<vmem>>, %arg3: memref<1x128xf32, #tpu.memory_space<vmem>>, %arg4: memref<128x128xbf16, #tpu.memory_space<vmem>>, %arg5: memref<1x128xf32, #tpu.memory_space<vmem>>, %arg6: memref<16x128xf32, #tpu.memory_space<vmem>>) attributes {dimension_semantics = [#tpu.dimension_semantics<parallel>], iteration_bounds = array<i64: 1>, scalar_prefetch = 0 : i64, scratch_operands = 0 : i64, tpu.core_type = #tpu.core_type<tc>, window_params = [{transform_indices = @transform_0, window_bounds = array<i64: 16, 128>}, {pipeline_mode = #tpu.pipeline_mode<synchronous>, transform_indices = @transform_1, window_bounds = array<i64: 128, 128>}, {pipeline_mode = #tpu.pipeline_mode<synchronous>, transform_indices = @transform_2, window_bounds = array<i64: 1, 128>}, {pipeline_mode = #tpu.pipeline_mode<synchronous>, transform_indices = @transform_3, window_bounds = array<i64: 128, 128>}, {pipeline_mode = #tpu.pipeline_mode<synchronous>, transform_indices = @transform_4, window_bounds = array<i64: 1, 128>}, {transform_indices = @transform_5, window_bounds = array<i64: 16, 128>}]} {
    %c0 = arith.constant 0 : index
    %c0_0 = arith.constant 0 : index
    %0 = vector.load %arg1[%c0, %c0_0] : memref<16x128xf32, #tpu.memory_space<vmem>>, vector<16x128xf32>
    %1 = arith.truncf %0 : vector<16x128xf32> to vector<16x128xbf16>
    %c0_1 = arith.constant 0 : index
    %c0_2 = arith.constant 0 : index
    %2 = vector.load %arg2[%c0_1, %c0_2] : memref<128x128xbf16, #tpu.memory_space<vmem>>, vector<128x128xbf16>
    %cst = arith.constant dense<0.000000e+00> : vector<16x128xf32>
    %3 = tpu.matmul %1, %2, %cst {dimension_numbers = #tpu.dot_dimension_numbers<[1], [0], [0], [1], [0, 0, 1, 1], [], []>} : vector<16x128xbf16>, vector<128x128xbf16>, vector<16x128xf32> -> vector<16x128xf32>
    %c0_3 = arith.constant 0 : index
    %c0_4 = arith.constant 0 : index
    %4 = vector.load %arg3[%c0_3, %c0_4] : memref<1x128xf32, #tpu.memory_space<vmem>>, vector<1x128xf32>
    %5 = vector.broadcast %4 : vector<1x128xf32> to vector<16x128xf32>
    %6 = arith.addf %3, %5 : vector<16x128xf32>
    %cst_5 = arith.constant 5.000000e-01 : f32
    %7 = vector.broadcast %cst_5 : f32 to vector<16x128xf32>
    %8 = arith.mulf %7, %6 : vector<16x128xf32>
    %cst_6 = arith.constant 4.471500e-02 : f32
    %9 = vector.broadcast %cst_6 : f32 to vector<16x128xf32>
    %10 = arith.mulf %9, %6 : vector<16x128xf32>
    %11 = arith.mulf %10, %6 : vector<16x128xf32>
    %12 = arith.mulf %11, %6 : vector<16x128xf32>
    %13 = arith.addf %6, %12 : vector<16x128xf32>
    %cst_7 = arith.constant 0.797884583 : f32
    %14 = vector.broadcast %cst_7 : f32 to vector<16x128xf32>
    %15 = arith.mulf %14, %13 : vector<16x128xf32>
    %16 = math.tanh %15 : vector<16x128xf32>
    %cst_8 = arith.constant 1.000000e+00 : f32
    %17 = vector.broadcast %cst_8 : f32 to vector<16x128xf32>
    %18 = arith.addf %17, %16 : vector<16x128xf32>
    %19 = arith.mulf %8, %18 : vector<16x128xf32>
    %20 = arith.truncf %19 : vector<16x128xf32> to vector<16x128xbf16>
    %c0_9 = arith.constant 0 : index
    %c0_10 = arith.constant 0 : index
    %21 = vector.load %arg4[%c0_9, %c0_10] : memref<128x128xbf16, #tpu.memory_space<vmem>>, vector<128x128xbf16>
    %cst_11 = arith.constant dense<0.000000e+00> : vector<16x128xf32>
    %22 = tpu.matmul %20, %21, %cst_11 {dimension_numbers = #tpu.dot_dimension_numbers<[1], [0], [0], [1], [0, 0, 1, 1], [], []>} : vector<16x128xbf16>, vector<128x128xbf16>, vector<16x128xf32> -> vector<16x128xf32>
    %c0_12 = arith.constant 0 : index
    %c0_13 = arith.constant 0 : index
    %23 = vector.load %arg5[%c0_12, %c0_13] : memref<1x128xf32, #tpu.memory_space<vmem>>, vector<1x128xf32>
    %24 = vector.broadcast %23 : vector<1x128xf32> to vector<16x128xf32>
    %25 = arith.addf %22, %24 : vector<16x128xf32>
    %c0_14 = arith.constant 0 : index
    %c0_15 = arith.constant 0 : index
    %26 = vector.load %arg6[%c0_14, %c0_15] : memref<16x128xf32, #tpu.memory_space<vmem>>, vector<16x128xf32>
    tpu.vector_store %arg6[%c0_14, %c0_15], %25 {strides = array<i32>} : memref<16x128xf32, #tpu.memory_space<vmem>>, vector<16x128xf32>,
    return
  }
  func.func @transform_0(%arg0: i32) -> (i32, i32) {
    %c0_i32 = arith.constant 0 : i32
    %c0_i32_0 = arith.constant 0 : i32
    return %arg0, %c0_i32 : i32, i32
  }
  func.func @transform_1(%arg0: i32) -> (i32, i32) {
    %c0_i32 = arith.constant 0 : i32
    %c0_i32_0 = arith.constant 0 : i32
    %c0_i32_1 = arith.constant 0 : i32
    return %c0_i32, %c0_i32_0 : i32, i32
  }
  func.func @transform_2(%arg0: i32) -> (i32, i32) {
    %c0_i32 = arith.constant 0 : i32
    %c0_i32_0 = arith.constant 0 : i32
    %c0_i32_1 = arith.constant 0 : i32
    return %c0_i32, %c0_i32_0 : i32, i32
  }
  func.func @transform_3(%arg0: i32) -> (i32, i32) {
    %c0_i32 = arith.constant 0 : i32
    %c0_i32_0 = arith.constant 0 : i32
    %c0_i32_1 = arith.constant 0 : i32
    return %c0_i32, %c0_i32_0 : i32, i32
  }
  func.func @transform_4(%arg0: i32) -> (i32, i32) {
    %c0_i32 = arith.constant 0 : i32
    %c0_i32_0 = arith.constant 0 : i32
    %c0_i32_1 = arith.constant 0 : i32
    return %c0_i32, %c0_i32_0 : i32, i32
  }
  func.func @transform_5(%arg0: i32) -> (i32, i32) {
    %c0_i32 = arith.constant 0 : i32
    %c0_i32_0 = arith.constant 0 : i32
    return %arg0, %c0_i32 : i32, i32
  }
}

</mosaic_0001>

<llo_original>
// kernel: tpu_custom_call.1
$region0: #{tpu_custom_call.1}
  #allocation0 [shape = 'u32[]', space=smem, size = 0x4, offset = 0x4, fixed_abs, tag = 'smem constant byte address 0x4 - core index']
  #allocation1 [shape = 'u32[72,128]{1,0:T(1,128)}', space=vmem, size = 0x9000, scoped, tag = 'internal scratch']
  %s0 = inlined_call_operand.hbm [shape: f32[16,128], index: 0, kind: input, shape index: {}]
  %s1 = inlined_call_operand.hbm [shape: bf16[128,128], index: 1, kind: input, shape index: {}]
  %s2 = inlined_call_operand.vmem [shape: f32[1,128], index: 2, kind: input, shape index: {}]
  %s3 = inlined_call_operand.hbm [shape: bf16[128,128], index: 3, kind: input, shape index: {}]
  %s4 = inlined_call_operand.vmem [shape: f32[1,128], index: 4, kind: input, shape index: {}]
  %s5 = inlined_call_operand.hbm [shape: f32[16,128], index: 5, kind: output, shape index: {}]
  %s6 = sld [smem:[#allocation0]]
  $region42: #{tpu_custom_call.1} parent=0
    _
  %s8 = ssub.s32 1, %s6
  %s9 = scalar_select 0, %s8, %s6
  $region1: #{tpu_custom_call.1} parent=0
    #allocation2 [shape = 'u8[8192]{0}', space=vmem, size = 0x2000, scoped, tag = 'input window, operand 0, single buffered']
    #allocation3 [shape = 's32[1]{0}', space=sflag, size = 0x4, scoped, tag = 'scoped memory for tpu_custom_call.1']
    #allocation4 [shape = 's32[1]{0}', space=sflag, size = 0x4, scoped, tag = 'scoped memory for tpu_custom_call.1']
    #allocation5 [shape = 'u8[32768]{0}', space=vmem, size = 0x8000, scoped, tag = 'input window, operand 1, single buffered']
    #allocation6 [shape = 's32[1]{0}', space=sflag, size = 0x4, scoped, tag = 'scoped memory for tpu_custom_call.1']
    #allocation7 [shape = 'u8[32768]{0}', space=vmem, size = 0x8000, scoped, tag = 'input window, operand 3, single buffered']
    #allocation8 [shape = 'u8[8192]{0}', space=vmem, size = 0x2000, scoped, tag = 'output window, operand 0, single buffered']
    %10 = vsyncpa [#allocation3], 0
    %11 = vsyncpa [#allocation6], 0
    %12 = vsyncpa [#allocation4], 0
    // Predicated region
    $region2: #{tpu_custom_call.1} parent=1 // pred_check
      _
    $region3: #{tpu_custom_call.1} parent=1 // pred_check_branch
      %14 = sbr.rel (0) target = $region5
    $region4: #{tpu_custom_call.1} parent=1 // pred_region
      %16 = vsyncadd [#allocation3], 0
      %s17 = sshll.u32 %s0, 4
      %s18 = int_to_ptr.hbm [resolvable:$true] %s17
      %s19 = sshll.u32 [#allocation2], 4
      %s20 = int_to_ptr.vmem [resolvable:$true] %s19
      %25 = dma.hbm_to_vmem [thread:$0]  %s18, 256, %s20, [#allocation3], 128, 128, 8
    $region5: #{tpu_custom_call.1} parent=1 // pred_fallthru
      _
    // Predicated region
    $region6: #{tpu_custom_call.1} parent=1 // pred_check
      _
    $region7: #{tpu_custom_call.1} parent=1 // pred_check_branch
      %27 = sbr.rel (0) target = $region9
    $region8: #{tpu_custom_call.1} parent=1 // pred_region
      %29 = vsyncadd [#allocation6], 0
      %s30 = sshll.u32 %s1, 4
      %s31 = int_to_ptr.hbm [resolvable:$true] %s30
      %s32 = sshll.u32 [#allocation5], 4
      %s33 = int_to_ptr.vmem [resolvable:$true] %s32
      %38 = dma.hbm_to_vmem [thread:$0]  %s31, 1024, %s33, [#allocation6], 64, 64, 4
    $region9: #{tpu_custom_call.1} parent=1 // pred_fallthru
      _
    // Predicated region
    $region10: #{tpu_custom_call.1} parent=1 // pred_check
      _
    $region11: #{tpu_custom_call.1} parent=1 // pred_check_branch
      %40 = sbr.rel (0) target = $region13
    $region12: #{tpu_custom_call.1} parent=1 // pred_region
      _
    $region13: #{tpu_custom_call.1} parent=1 // pred_fallthru
      _
    // Predicated region
    $region14: #{tpu_custom_call.1} parent=1 // pred_check
      _
    $region15: #{tpu_custom_call.1} parent=1 // pred_check_branch
      %42 = sbr.rel (0) target = $region17
    $region16: #{tpu_custom_call.1} parent=1 // pred_region
      %44 = vsyncadd [#allocation6], 0
      %s45 = sshll.u32 %s3, 4
      %s46 = int_to_ptr.hbm [resolvable:$true] %s45
      %s47 = sshll.u32 [#allocation7], 4
      %s48 = int_to_ptr.vmem [resolvable:$true] %s47
      %53 = dma.hbm_to_vmem [thread:$0]  %s46, 1024, %s48, [#allocation6], 64, 64, 4
    $region17: #{tpu_custom_call.1} parent=1 // pred_fallthru
      _
    // Predicated region
    $region18: #{tpu_custom_call.1} parent=1 // pred_check
      _
    $region19: #{tpu_custom_call.1} parent=1 // pred_check_branch
      %55 = sbr.rel (0) target = $region21
    $region20: #{tpu_custom_call.1} parent=1 // pred_region
      _
    $region21: #{tpu_custom_call.1} parent=1 // pred_fallthru
      _
    // Predicated region
    $region22: #{tpu_custom_call.1} parent=1 // pred_check
      _
    $region23: #{tpu_custom_call.1} parent=1 // pred_check_branch
      %57 = sbr.rel (0) target = $region25
    $region24: #{tpu_custom_call.1} parent=1 // pred_region
      %59 = dma.done [#allocation3], 256
    $region25: #{tpu_custom_call.1} parent=1 // pred_fallthru
      _
    // Predicated region
    $region26: #{tpu_custom_call.1} parent=1 // pred_check
      _
    $region27: #{tpu_custom_call.1} parent=1 // pred_check_branch
      %61 = sbr.rel (0) target = $region29
    $region28: #{tpu_custom_call.1} parent=1 // pred_region
      %63 = dma.done [#allocation6], 1024
    $region29: #{tpu_custom_call.1} parent=1 // pred_fallthru
      _
    // Predicated region
    $region30: #{tpu_custom_call.1} parent=1 // pred_check
      _
    $region31: #{tpu_custom_call.1} parent=1 // pred_check_branch
      %65 = sbr.rel (0) target = $region33
    $region32: #{tpu_custom_call.1} parent=1 // pred_region
      %67 = dma.done [#allocation6], 1024
    $region33: #{tpu_custom_call.1} parent=1 // pred_fallthru
      _
    %v68 = vld [vmem:[#allocation2] sm:$0xff]
    %v69 = vld [vmem:[#allocation2 + $0x8] sm:$0xff]
    %v70 = vpack.c.bf16 %v69, %v68
    %v71 = vld [vmem:[#allocation5] sm:$0xf]
    %v72 = vld [vmem:[#allocation5 + $0x4] sm:$0xf]
    %v73 = vld [vmem:[#allocation5 + $0x8] sm:$0xf]
    %v74 = vld [vmem:[#allocation5 + $0xc] sm:$0xf]
    %v75 = vld [vmem:[#allocation5 + $0x10] sm:$0xf]
    %v76 = vld [vmem:[#allocation5 + $0x14] sm:$0xf]
    %v77 = vld [vmem:[#allocation5 + $0x18] sm:$0xf]
    %v78 = vld [vmem:[#allocation5 + $0x1c] sm:$0xf]
    %v79 = vld [vmem:[#allocation5 + $0x20] sm:$0xf]
    %v80 = vld [vmem:[#allocation5 + $0x24] sm:$0xf]
    %v81 = vld [vmem:[#allocation5 + $0x28] sm:$0xf]
    %v82 = vld [vmem:[#allocation5 + $0x2c] sm:$0xf]
    %v83 = vld [vmem:[#allocation5 + $0x30] sm:$0xf]
    %v84 = vld [vmem:[#allocation5 + $0x34] sm:$0xf]
    %v85 = vld [vmem:[#allocation5 + $0x38] sm:$0xf]
    %v86 = vld [vmem:[#allocation5 + $0x3c] sm:$0xf]
    %v87 = vld [vmem:[%s2] sm:$0x1]
    %v89 = vperm.slane %v87, 0
    %v107 = vunpack.c.l.b16 %v71
    %v108 = vunpack.c.l.b16 %v72
    %v109 = vunpack.c.l.b16 %v73
    %v110 = vunpack.c.l.b16 %v74
    %v111 = vunpack.c.l.b16 %v75
    %v112 = vunpack.c.l.b16 %v76
    %v113 = vunpack.c.l.b16 %v77
    %v114 = vunpack.c.l.b16 %v78
    %v115 = vunpack.c.l.b16 %v79
    %v116 = vunpack.c.l.b16 %v80
    %v117 = vunpack.c.l.b16 %v81
    %v118 = vunpack.c.l.b16 %v82
    %v119 = vunpack.c.l.b16 %v83
    %v120 = vunpack.c.l.b16 %v84
    %v121 = vunpack.c.l.b16 %v85
    %v122 = vunpack.c.l.b16 %v86
    %v123 = vpack.c.b16 %v108, %v107
    %v124 = vpack.c.b16 %v110, %v109
    %v125 = vpack.c.b16 %v112, %v111
    %v126 = vpack.c.b16 %v114, %v113
    %v127 = vpack.c.b16 %v116, %v115
    %v128 = vpack.c.b16 %v118, %v117
    %v129 = vpack.c.b16 %v120, %v119
    %v130 = vpack.c.b16 %v122, %v121
    %139 = vmatpush.bf16.msra.mxu0 %v130
    %140 = vmatpush.bf16.msra.mxu0 %v129
    %141 = vmatpush.bf16.msra.mxu0 %v128
    %142 = vmatpush.bf16.msra.mxu0 %v127
    %143 = vmatpush.bf16.msra.mxu0 %v126
    %144 = vmatpush.bf16.msra.mxu0 %v125
    %145 = vmatpush.bf16.msra.mxu0 %v124
    %146 = vmatpush.bf16.msra.mxu0 %v123
    %147 = vmatmul.bf16.gmra.mxu0 %v70
    %v148 = vpop.f32.mrf.mxu0
    %v149 = vadd.f32 %v89, %v148
    %v150 = vpop.f32.mrf.mxu0
    %v151 = vadd.f32 %v89, %v150
    %152 = vdwg.mxu0
    %v153 = vmul.f32 %v149, 0.5
    %v154 = vmul.f32 %v151, 0.5
    %v155 = vmul.f32 %v149, 0.044715
    %v156 = vmul.f32 %v151, 0.044715
    %v157 = vmul.f32 %v155, %v149
    %v158 = vmul.f32 %v156, %v151
    %v159 = vmul.f32 %v157, %v149
    %v160 = vmul.f32 %v158, %v151
    %v161 = vadd.f32 %v149, %v159
    %v162 = vadd.f32 %v151, %v160
    %v163 = vmul.f32 %v161, 0.7978846
    %v164 = vmul.f32 %v162, 0.7978846
    %v165 = vtanh.pop %v163
    %v166 = vtanh.pop %v164
    %v167 = vadd.f32 %v165, 1.0
    %v168 = vadd.f32 %v166, 1.0
    %v169 = vmul.f32 %v153, %v167
    %v170 = vmul.f32 %v154, %v168
    %v171 = vpack.c.bf16 %v170, %v169
    %v172 = vld [vmem:[#allocation7] sm:$0xf]
    %v173 = vld [vmem:[#allocation7 + $0x4] sm:$0xf]
    %v174 = vld [vmem:[#allocation7 + $0x8] sm:$0xf]
    %v175 = vld [vmem:[#allocation7 + $0xc] sm:$0xf]
    %v176 = vld [vmem:[#allocation7 + $0x10] sm:$0xf]
    %v177 = vld [vmem:[#allocation7 + $0x14] sm:$0xf]
    %v178 = vld [vmem:[#allocation7 + $0x18] sm:$0xf]
    %v179 = vld [vmem:[#allocation7 + $0x1c] sm:$0xf]
    %v180 = vld [vmem:[#allocation7 + $0x20] sm:$0xf]
    %v181 = vld [vmem:[#allocation7 + $0x24] sm:$0xf]
    %v182 = vld [vmem:[#allocation7 + $0x28] sm:$0xf]
    %v183 = vld [vmem:[#allocation7 + $0x2c] sm:$0xf]
    %v184 = vld [vmem:[#allocation7 + $0x30] sm:$0xf]
    %v185 = vld [vmem:[#allocation7 + $0x34] sm:$0xf]
    %v186 = vld [vmem:[#allocation7 + $0x38] sm:$0xf]
    %v187 = vld [vmem:[#allocation7 + $0x3c] sm:$0xf]
    %v188 = vld [vmem:[%s4] sm:$0x1]
    %v190 = vperm.slane %v188, 0
    %v208 = vunpack.c.l.b16 %v172
    %v209 = vunpack.c.l.b16 %v173
    %v210 = vunpack.c.l.b16 %v174
    %v211 = vunpack.c.l.b16 %v175
    %v212 = vunpack.c.l.b16 %v176
    %v213 = vunpack.c.l.b16 %v177
    %v214 = vunpack.c.l.b16 %v178
    %v215 = vunpack.c.l.b16 %v179
    %v216 = vunpack.c.l.b16 %v180
    %v217 = vunpack.c.l.b16 %v181
    %v218 = vunpack.c.l.b16 %v182
    %v219 = vunpack.c.l.b16 %v183
    %v220 = vunpack.c.l.b16 %v184
    %v221 = vunpack.c.l.b16 %v185
    %v222 = vunpack.c.l.b16 %v186
    %v223 = vunpack.c.l.b16 %v187
    %v224 = vpack.c.b16 %v209, %v208
    %v225 = vpack.c.b16 %v211, %v210
    %v226 = vpack.c.b16 %v213, %v212
    %v227 = vpack.c.b16 %v215, %v214
    %v228 = vpack.c.b16 %v217, %v216
    %v229 = vpack.c.b16 %v219, %v218
    %v230 = vpack.c.b16 %v221, %v220
    %v231 = vpack.c.b16 %v223, %v222
    %240 = vmatpush.bf16.msra.mxu0 %v231
    %241 = vmatpush.bf16.msra.mxu0 %v230
    %242 = vmatpush.bf16.msra.mxu0 %v229
    %243 = vmatpush.bf16.msra.mxu0 %v228
    %244 = vmatpush.bf16.msra.mxu0 %v227
    %245 = vmatpush.bf16.msra.mxu0 %v226
    %246 = vmatpush.bf16.msra.mxu0 %v225
    %247 = vmatpush.bf16.msra.mxu0 %v224
    %248 = vmatmul.bf16.gmra.mxu0 %v171
    %v249 = vpop.f32.mrf.mxu0
    %v250 = vadd.f32 %v190, %v249
    %v251 = vpop.f32.mrf.mxu0
    %v252 = vadd.f32 %v190, %v251
    %253 = vdwg.mxu0
    %254 = vst [vmem:[#allocation8] sm:$0xff] %v250
    %255 = vst [vmem:[#allocation8 + $0x8] sm:$0xff] %v252
    // Predicated region
    $region34: #{tpu_custom_call.1} parent=1 // pred_check
      _
    $region35: #{tpu_custom_call.1} parent=1 // pred_check_branch
      %257 = sbr.rel (0) target = $region37
    $region36: #{tpu_custom_call.1} parent=1 // pred_region
      %259 = vsyncadd [#allocation4], 0
      %s260 = sshll.u32 [#allocation8], 4
      %s261 = int_to_ptr.vmem [resolvable:$true] %s260
      %s262 = sshll.u32 %s5, 4
      %s263 = int_to_ptr.hbm [resolvable:$true] %s262
      %268 = dma.vmem_to_hbm [thread:$0]  %s261, 256, %s263, [#allocation4], 128, 128, 8
    $region37: #{tpu_custom_call.1} parent=1 // pred_fallthru
      _
    // Predicated region
    $region38: #{tpu_custom_call.1} parent=1 // pred_check
      _
    $region39: #{tpu_custom_call.1} parent=1 // pred_check_branch
      %270 = sbr.rel (0) target = $region41
    $region40: #{tpu_custom_call.1} parent=1 // pred_region
      %272 = dma.done [#allocation4], 256
    $region41: #{tpu_custom_call.1} parent=1 // pred_fallthru
      _
    %273 = vsyncpa [#allocation3], 1
    %274 = vsyncpa [#allocation6], 1
    %275 = vsyncpa [#allocation4], 1

</llo_original>
